<compile_context>
chip_gen: v5e
topology: v5e:2x2
jax: 0.10.0
libtpu: 0.0.40
codegen_flags: <defaults>
</compile_context>

<pallas_src>
import functools

import jax
import jax.numpy as jnp
from jax.experimental import pallas as pl
from jax.experimental.pallas import tpu as pltpu

_GELU_C = 0.7978845608028654  # sqrt(2/pi), for gelu_new


def _round_up(n, m):
    return ((n + m - 1) // m) * m


def _moe_kernel(x_ref, gw_ref, w1_ref, b1_ref, w2_ref, b2_ref,
                out_ref, logits_ref,
                acc_sc, scale_sc, sel_sc, *, top_k, num_experts):
    e = pl.program_id(1)          # expert index (real experts only)
    ki = pl.program_id(2)         # inner-dim tile index
    n_e = pl.num_programs(1)
    n_k = pl.num_programs(2)

    # ---- once per token tile (e == 0, k == 0): routing + accumulator init ----
    @pl.when(jnp.logical_and(e == 0, ki == 0))
    def _():
        x = x_ref[...]
        # Router logits on the MXU, f32 accumulation.  gw is lane-padded to a
        # multiple of 128 (padded columns are zero).
        logits = jnp.dot(x, gw_ref[...], preferred_element_type=jnp.float32)   # (T, Ep)
        logits_ref[...] = logits.astype(logits_ref.dtype)

        lane = jax.lax.broadcasted_iota(jnp.int32, logits.shape, 1)
        logits_m = jnp.where(lane < num_experts, logits, -jnp.inf)             # mask pad lanes

        # softmax over (real) experts
        m = jnp.max(logits_m, axis=-1, keepdims=True)
        p = jnp.exp(logits_m - m)
        probs = p / jnp.sum(p, axis=-1, keepdims=True)                          # (T, Ep)

        # top-k (first-occurrence tie-break, like torch.topk); stash the k
        # selected expert ids and the summed routing weight in VMEM scratch.
        sentinel = logits.shape[-1]
        w = probs
        scale = jnp.zeros((probs.shape[0], 1), jnp.float32)
        for j in range(top_k):
            mx = jnp.max(w, axis=-1, keepdims=True)
            am = jnp.min(jnp.where(w == mx, lane, sentinel),
                         axis=-1, keepdims=True)                                # argmax
            scale = scale + mx
            sel_sc[:, j:j + 1] = am
            w = jnp.where(lane == am, -jnp.inf, w)
        scale_sc[...] = scale
        acc_sc[...] = jnp.zeros_like(acc_sc)

    # ---- every (expert, inner-tile) step: partial expert MLP, masked accumulate ----
    # TODO(synk): skip the two matmuls entirely (pl.when on a routed-token
    # count) when no token in the tile selects expert `e`; only worthwhile for
    # large expert counts / skewed routing.
    x = x_ref[...]
    h = jnp.dot(x, w1_ref[0], preferred_element_type=jnp.float32) + b1_ref[0]   # (T, It)
    h = 0.5 * h * (1.0 + jnp.tanh(_GELU_C * (h + 0.044715 * h * h * h)))        # gelu_new
    y = jnp.dot(h.astype(x.dtype), w2_ref[0],
                preferred_element_type=jnp.float32)                              # (T, H)
    # Output bias is added exactly once per expert (on its first inner tile).
    y = y + b2_ref[0] * (ki == 0).astype(jnp.float32)

    hits = (sel_sc[...] == e).astype(jnp.float32)                               # (T, k)
    selected = jnp.sum(hits, axis=-1, keepdims=True) > 0.0                      # (T, 1)
    gate = jnp.where(selected, scale_sc[...], 0.0)                              # (T, 1)
    acc_sc[...] += y * gate

    # ---- last (expert, inner-tile) step: cast + write the resident output once ----
    @pl.when(jnp.logical_and(e == n_e - 1, ki == n_k - 1))
    def _():
        out_ref[...] = acc_sc[...].astype(out_ref.dtype)


def lola_moe_forward(x, gate_w_t, w1, b1, w2, b2, *, top_k, t_tile=256,
                     i_tile=512, weight_buffers=2, vmem_limit_bytes=None):
    """x: (B, S, H); gate_w_t: (H, E); w1: (E, H, I); b1: (E, 1, I);
    w2: (E, I, H); b2: (E, 1, H).  Returns (out (B,S,H), router_logits (B*S, E)).

    `t_tile`: target token tile (clamped to the problem; T is padded to a
    multiple of the effective tile).  `i_tile`: FFN-inner-dim tile (I is
    zero-padded to a multiple; gelu(0)=0 and zero W2 rows keep padding exact).
    `weight_buffers`: >2 enables deeper pipelining of the weight slabs."""
    B, S, H = x.shape
    T = B * S
    E, _, I = w1.shape
    assert gate_w_t.shape == (H, E)

    # Effective token tile: multiple of 8 sublanes, never larger than T (rounded).
    t_eff = min(t_tile, _round_up(T, 8))
    t_eff = max(8, (t_eff // 8) * 8)
    T_pad = _round_up(T, t_eff)

    # Effective inner tile: multiple of 128 lanes, never larger than I (rounded).
    i_eff = min(i_tile, _round_up(I, 128))
    i_eff = max(128, (i_eff // 128) * 128)
    I_pad = _round_up(I, i_eff)

    # Lane-pad the expert axis of the gate / router logits for lane-dense stores.
    E_pad = _round_up(E, 128)

    xf = x.reshape(T, H)
    if T_pad != T:
        xf = jnp.pad(xf, ((0, T_pad - T), (0, 0)))
    gw = gate_w_t if E_pad == E else jnp.pad(gate_w_t, ((0, 0), (0, E_pad - E)))
    w1p, b1p, w2p = w1, b1, w2
    if I_pad != I:
        w1p = jnp.pad(w1, ((0, 0), (0, 0), (0, I_pad - I)))
        b1p = jnp.pad(b1, ((0, 0), (0, 0), (0, I_pad - I)))
        w2p = jnp.pad(w2, ((0, 0), (0, I_pad - I), (0, 0)))

    # Estimated VMEM need (double-buffered blocks + scratch), capped at 64 MiB
    # so the same setting is legal on v5e/v6e/v7x.
    if vmem_limit_bytes is None:
        isz = lambda a: jnp.dtype(a.dtype).itemsize
        blocks = (t_eff * H * isz(x)                        # x tile
                  + H * E_pad * isz(gw)                     # gate weight (resident)
                  + H * i_eff * isz(w1) + i_eff * isz(b1)   # W1 slab, b1 slab
                  + i_eff * H * isz(w2) + H * isz(b2)       # W2 slab, b2[e]
                  + t_eff * H * isz(x)                      # out tile
                  + t_eff * E_pad * 4)                      # router-logits tile
        scratch = t_eff * H * 4 + 2 * t_eff * 128 * 4       # f32 acc + scale/sel
        est = (2 * blocks
               + max(0, weight_buffers - 2) * (H * i_eff * isz(w1) + i_eff * H * isz(w2))
               + scratch)
        vmem_limit_bytes = int(min(64 << 20,
                                   max(int(1.5 * est) + (2 << 20), 16 << 20)))

    wkw = {} if weight_buffers == 2 else dict(pipeline_mode=pl.Buffered(weight_buffers))

    kernel = functools.partial(_moe_kernel, top_k=top_k, num_experts=E)
    out, logits = pl.pallas_call(
        kernel,
        out_shape=(jax.ShapeDtypeStruct((T_pad, H), x.dtype),
                   jax.ShapeDtypeStruct((T_pad, E_pad), jnp.float32)),
        grid_spec=pltpu.PrefetchScalarGridSpec(
            num_scalar_prefetch=0,
            grid=(T_pad // t_eff, E, I_pad // i_eff),
            in_specs=[
                pl.BlockSpec((t_eff, H), lambda i, e, k: (i, 0)),             # x tile (resident over e,k)
                pl.BlockSpec((H, E_pad), lambda i, e, k: (0, 0)),             # gate weight (resident)
                pl.BlockSpec((1, H, i_eff), lambda i, e, k: (e, 0, k), **wkw),  # W1[e] slab
                pl.BlockSpec((1, 1, i_eff), lambda i, e, k: (e, 0, k)),         # b1[e] slab
                pl.BlockSpec((1, i_eff, H), lambda i, e, k: (e, k, 0), **wkw),  # W2[e] slab
                pl.BlockSpec((1, 1, H), lambda i, e, k: (e, 0, 0)),             # b2[e]
            ],
            out_specs=[
                pl.BlockSpec((t_eff, H), lambda i, e, k: (i, 0)),     # out (resident over e,k)
                pl.BlockSpec((t_eff, E_pad), lambda i, e, k: (i, 0)),  # router logits (lane-dense)
            ],
            scratch_shapes=[
                pltpu.VMEM((t_eff, H), jnp.float32),      # f32 output accumulator
                pltpu.VMEM((t_eff, 1), jnp.float32),      # summed top-k routing weight
                pltpu.VMEM((t_eff, top_k), jnp.int32),    # selected expert ids
            ],
        ),
        compiler_params=pltpu.CompilerParams(
            dimension_semantics=("parallel", "arbitrary", "arbitrary"),
            vmem_limit_bytes=vmem_limit_bytes),
    )(xf, gw, w1p, b1p, w2p, b2)

    if T_pad != T:
        out = out[:T]
    logits = logits[:T, :E]
    return out.reshape(B, S, H), logits


def lola_moe_reference(x, gate_w_t, w1, b1, w2, b2, *, top_k):
    """Pure-JAX reference mirroring the PyTorch forward."""
    B, S, H = x.shape
    xf = x.reshape(-1, H)
    logits = xf @ gate_w_t
    probs = jax.nn.softmax(logits, axis=-1)
    topw, topi = jax.lax.top_k(probs, top_k)
    scale = topw.sum(-1, keepdims=True)
    E = gate_w_t.shape[1]
    out = jnp.zeros_like(xf)
    for e in range(E):
        sel = (topi == e).any(-1, keepdims=True)
        h = xf @ w1[e] + b1[e]
        h = 0.5 * h * (1.0 + jnp.tanh(_GELU_C * (h + 0.044715 * h ** 3)))
        y = h @ w2[e] + b2[e]
        out = out + y * jnp.where(sel, scale, 0.0)
    return out.reshape(B, S, H), logits


if __name__ == "__main__":
    # Small shapes consistent with the module: hidden=32, inner=4*hidden, 4 experts, top-1.
    B, S, H = 2, 8, 32
    INNER = 4 * H
    E, K = 4, 1   # top_k=1: the only k for which the torch reference's indexing is well-defined

    key = jax.random.PRNGKey(0)
    k0, k1, k2, k3, k4, k5 = jax.random.split(key, 6)
    x = jax.random.normal(k0, (B, S, H), jnp.float32)
    # torch nn.Linear(H, E, bias=False) weight has shape (E, H); kernel takes its transpose.
    gate_w = jax.random.normal(k1, (E, H), jnp.float32) * 0.5
    gate_w_t = gate_w.T                                             # (H, E)
    w1 = jax.random.normal(k2, (E, H, INNER), jnp.float32) * 0.02   # Conv1D c_fc weight (nx, nf)
    b1 = jax.random.normal(k3, (E, 1, INNER), jnp.float32) * 0.02
    w2 = jax.random.normal(k4, (E, INNER, H), jnp.float32) * 0.02   # Conv1D c_proj weight
    b2 = jax.random.normal(k5, (E, 1, H), jnp.float32) * 0.02

    out, router_logits = lola_moe_forward(x, gate_w_t, w1, b1, w2, b2, top_k=K)
    jax.block_until_ready((out, router_logits))

    ref_out, ref_logits = lola_moe_reference(x, gate_w_t, w1, b1, w2, b2, top_k=K)
    assert out.shape == (B, S, H) and router_logits.shape == (B * S, E)
    assert jnp.allclose(router_logits, ref_logits, atol=5e-3, rtol=5e-2)
    assert jnp.allclose(out, ref_out, atol=5e-3, rtol=5e-2)

    # Exercise the ragged/padded-token-tile path (T not a multiple of 8).
    x2 = jax.random.normal(jax.random.PRNGKey(7), (1, 5, H), jnp.float32)
    out2, logits2 = lola_moe_forward(x2, gate_w_t, w1, b1, w2, b2, top_k=K)
    jax.block_until_ready((out2, logits2))
    ref_out2, ref_logits2 = lola_moe_reference(x2, gate_w_t, w1, b1, w2, b2, top_k=K)
    assert jnp.allclose(logits2, ref_logits2, atol=5e-3, rtol=5e-2)
    assert jnp.allclose(out2, ref_out2, atol=5e-3, rtol=5e-2)

    # Exercise the inner-dim tiling + padding path (I not a multiple of the tile,
    # multiple inner tiles per expert, b2 added exactly once).
    INNER3 = 192
    j0, j1, j2, j3 = jax.random.split(jax.random.PRNGKey(11), 4)
    w1c = jax.random.normal(j0, (E, H, INNER3), jnp.float32) * 0.02
    b1c = jax.random.normal(j1, (E, 1, INNER3), jnp.float32) * 0.02
    w2c = jax.random.normal(j2, (E, INNER3, H), jnp.float32) * 0.02
    b2c = jax.random.normal(j3, (E, 1, H), jnp.float32) * 0.02
    out3, logits3 = lola_moe_forward(x, gate_w_t, w1c, b1c, w2c, b2c,
                                     top_k=K, i_tile=128)
    jax.block_until_ready((out3, logits3))
    ref_out3, ref_logits3 = lola_moe_reference(x, gate_w_t, w1c, b1c, w2c, b2c, top_k=K)
    assert jnp.allclose(logits3, ref_logits3, atol=5e-3, rtol=5e-2)
    assert jnp.allclose(out3, ref_out3, atol=5e-3, rtol=5e-2)

    print("KERNEL_OK")
</pallas_src>

<mosaic_0001>
module attributes {stable_mosaic.version = 11 : i64} {
  func.func @_moe_kernel(%arg0: i32, %arg1: i32, %arg2: i32, %arg3: memref<16x32xf32, #tpu.memory_space<vmem>>, %arg4: memref<32x128xf32, #tpu.memory_space<vmem>>, %arg5: memref<1x32x128xf32, #tpu.memory_space<vmem>>, %arg6: memref<1x1x128xf32, #tpu.memory_space<vmem>>, %arg7: memref<1x128x32xf32, #tpu.memory_space<vmem>>, %arg8: memref<1x1x32xf32, #tpu.memory_space<vmem>>, %arg9: memref<16x32xf32, #tpu.memory_space<vmem>>, %arg10: memref<16x128xf32, #tpu.memory_space<vmem>>, %arg11: memref<16x32xf32, #tpu.memory_space<vmem>>, %arg12: memref<16x1xf32, #tpu.memory_space<vmem>>, %arg13: memref<16x1xi32, #tpu.memory_space<vmem>>) attributes {dimension_semantics = [#tpu.dimension_semantics<parallel>, #tpu.dimension_semantics<arbitrary>, #tpu.dimension_semantics<arbitrary>], iteration_bounds = array<i64: 1, 4, 1>, scalar_prefetch = 0 : i64, scratch_operands = 3 : i64, tpu.core_type = #tpu.core_type<tc>, window_params = [{transform_indices = @transform_0, window_bounds = array<i64: 16, 32>}, {pipeline_mode = #tpu.pipeline_mode<synchronous>, transform_indices = @transform_1, window_bounds = array<i64: 32, 128>}, {transform_indices = @transform_2, window_bounds = array<i64: 1, 32, 128>}, {transform_indices = @transform_3, window_bounds = array<i64: 1, 1, 128>}, {transform_indices = @transform_4, window_bounds = array<i64: 1, 128, 32>}, {transform_indices = @transform_5, window_bounds = array<i64: 1, 1, 32>}, {transform_indices = @transform_6, window_bounds = array<i64: 16, 32>}, {transform_indices = @transform_7, window_bounds = array<i64: 16, 128>}]} {
    %c0_i32 = arith.constant 0 : i32
    %0 = arith.cmpi eq, %arg1, %c0_i32 : i32
    %c0_i32_0 = arith.constant 0 : i32
    %1 = arith.cmpi eq, %arg2, %c0_i32_0 : i32
    %2 = arith.andi %0, %1 : i1
    %3 = arith.extui %2 : i1 to i32
    %c0_i32_1 = arith.constant 0 : i32
    %4 = arith.cmpi ne, %3, %c0_i32_1 : i32
    scf.if %4 {
      %c0_34 = arith.constant 0 : index
      %c0_35 = arith.constant 0 : index
      %60 = vector.load %arg3[%c0_34, %c0_35] : memref<16x32xf32, #tpu.memory_space<vmem>>, vector<16x32xf32>
      %c0_36 = arith.constant 0 : index
      %c0_37 = arith.constant 0 : index
      %61 = vector.load %arg4[%c0_36, %c0_37] : memref<32x128xf32, #tpu.memory_space<vmem>>, vector<32x128xf32>
      %cst_38 = arith.constant dense<0.000000e+00> : vector<16x128xf32>
      %62 = tpu.matmul %60, %61, %cst_38 {dimension_numbers = #tpu.dot_dimension_numbers<[1], [0], [0], [1], [0, 0, 1, 1], [], []>} : vector<16x32xf32>, vector<32x128xf32>, vector<16x128xf32> -> vector<16x128xf32>
      %c0_39 = arith.constant 0 : index
      %c0_40 = arith.constant 0 : index
      %63 = vector.load %arg10[%c0_39, %c0_40] : memref<16x128xf32, #tpu.memory_space<vmem>>, vector<16x128xf32>
      tpu.vector_store %arg10[%c0_39, %c0_40], %62 {strides = array<i32>} : memref<16x128xf32, #tpu.memory_space<vmem>>, vector<16x128xf32>,
      %64 = tpu.iota {dimensions = array<i32: 1>} : vector<16x128xi32>
      %c4_i32 = arith.constant 4 : i32
      %65 = vector.broadcast %c4_i32 : i32 to vector<16x128xi32>
      %66 = arith.cmpi slt, %64, %65 : vector<16x128xi32>
      %cst_41 = arith.constant 0xFF800000 : f32
      %67 = vector.broadcast %cst_41 : f32 to vector<16x128xf32>
      %68 = arith.select %66, %62, %67 : vector<16x128xi1>, vector<16x128xf32>
      %cst_42 = arith.constant dense<0xFF800000> : vector<16xf32>
      %69 = vector.multi_reduction <maximumf>, %68, %cst_42 [1] : vector<16x128xf32> to vector<16xf32>
      %70 = vector.shape_cast %69 : vector<16xf32> to vector<16x1xf32>
      %71 = vector.broadcast %70 : vector<16x1xf32> to vector<16x128xf32>
      %72 = arith.subf %68, %71 : vector<16x128xf32>
      %73 = math.exp %72 : vector<16x128xf32>
      %cst_43 = arith.constant dense<0.000000e+00> : vector<16xf32>
      %74 = vector.multi_reduction <add>, %73, %cst_43 [1] : vector<16x128xf32> to vector<16xf32>
      %75 = vector.shape_cast %74 : vector<16xf32> to vector<16x1xf32>
      %76 = vector.broadcast %75 : vector<16x1xf32> to vector<16x128xf32>
      %77 = arith.divf %73, %76 : vector<16x128xf32>
      %cst_44 = arith.constant 0.000000e+00 : f32
      %78 = vector.broadcast %cst_44 : f32 to vector<16x1xf32>
      %cst_45 = arith.constant dense<0xFF800000> : vector<16xf32>
      %79 = vector.multi_reduction <maximumf>, %77, %cst_45 [1] : vector<16x128xf32> to vector<16xf32>
      %80 = vector.shape_cast %79 : vector<16xf32> to vector<16x1xf32>
      %81 = vector.broadcast %80 : vector<16x1xf32> to vector<16x128xf32>
      %82 = arith.cmpf oeq, %77, %81 : vector<16x128xf32>
      %c128_i32 = arith.constant 128 : i32
      %83 = vector.broadcast %c128_i32 : i32 to vector<16x128xi32>
      %84 = arith.select %82, %64, %83 : vector<16x128xi1>, vector<16x128xi32>
      %cst_46 = arith.constant dense<2147483647> : vector<16xi32>
      %85 = vector.multi_reduction <minsi>, %84, %cst_46 [1] : vector<16x128xi32> to vector<16xi32>
      %86 = vector.shape_cast %85 : vector<16xi32> to vector<16x1xi32>
      %87 = arith.addf %78, %80 : vector<16x1xf32>
      %c0_47 = arith.constant 0 : index
      %c0_48 = arith.constant 0 : index
      %88 = vector.load %arg13[%c0_47, %c0_48] : memref<16x1xi32, #tpu.memory_space<vmem>>, vector<16x1xi32>
      tpu.vector_store %arg13[%c0_47, %c0_48], %86 {strides = array<i32>} : memref<16x1xi32, #tpu.memory_space<vmem>>, vector<16x1xi32>,
      %c0_49 = arith.constant 0 : index
      %c0_50 = arith.constant 0 : index
      %89 = vector.load %arg12[%c0_49, %c0_50] : memref<16x1xf32, #tpu.memory_space<vmem>>, vector<16x1xf32>
      tpu.vector_store %arg12[%c0_49, %c0_50], %87 {strides = array<i32>} : memref<16x1xf32, #tpu.memory_space<vmem>>, vector<16x1xf32>,
      %cst_51 = arith.constant 0.000000e+00 : f32
      %90 = vector.broadcast %cst_51 : f32 to vector<16x32xf32>
      %c0_52 = arith.constant 0 : index
      %c0_53 = arith.constant 0 : index
      %91 = vector.load %arg11[%c0_52, %c0_53] : memref<16x32xf32, #tpu.memory_space<vmem>>, vector<16x32xf32>
      tpu.vector_store %arg11[%c0_52, %c0_53], %90 {strides = array<i32>} : memref<16x32xf32, #tpu.memory_space<vmem>>, vector<16x32xf32>,
    } else {
    }
    %c0 = arith.constant 0 : index
    %c0_2 = arith.constant 0 : index
    %5 = vector.load %arg3[%c0, %c0_2] : memref<16x32xf32, #tpu.memory_space<vmem>>, vector<16x32xf32>
    %c0_3 = arith.constant 0 : index
    %c0_4 = arith.constant 0 : index
    %c0_5 = arith.constant 0 : index
    %6 = vector.load %arg5[%c0_3, %c0_4, %c0_5] : memref<1x32x128xf32, #tpu.memory_space<vmem>>, vector<1x32x128xf32>
    %7 = vector.shape_cast %6 : vector<1x32x128xf32> to vector<32x128xf32>
    %cst = arith.constant dense<0.000000e+00> : vector<16x128xf32>
    %8 = tpu.matmul %5, %7, %cst {dimension_numbers = #tpu.dot_dimension_numbers<[1], [0], [0], [1], [0, 0, 1, 1], [], []>} : vector<16x32xf32>, vector<32x128xf32>, vector<16x128xf32> -> vector<16x128xf32>
    %c0_6 = arith.constant 0 : index
    %c0_7 = arith.constant 0 : index
    %c0_8 = arith.constant 0 : index
    %9 = vector.load %arg6[%c0_6, %c0_7, %c0_8] : memref<1x1x128xf32, #tpu.memory_space<vmem>>, vector<1x1x128xf32>
    %10 = vector.shape_cast %9 : vector<1x1x128xf32> to vector<1x128xf32>
    %11 = vector.broadcast %10 : vector<1x128xf32> to vector<16x128xf32>
    %12 = arith.addf %8, %11 : vector<16x128xf32>
    %cst_9 = arith.constant 5.000000e-01 : f32
    %13 = vector.broadcast %cst_9 : f32 to vector<16x128xf32>
    %14 = arith.mulf %13, %12 : vector<16x128xf32>
    %cst_10 = arith.constant 4.471500e-02 : f32
    %15 = vector.broadcast %cst_10 : f32 to vector<16x128xf32>
    %16 = arith.mulf %15, %12 : vector<16x128xf32>
    %17 = arith.mulf %16, %12 : vector<16x128xf32>
    %18 = arith.mulf %17, %12 : vector<16x128xf32>
    %19 = arith.addf %12, %18 : vector<16x128xf32>
    %cst_11 = arith.constant 0.797884583 : f32
    %20 = vector.broadcast %cst_11 : f32 to vector<16x128xf32>
    %21 = arith.mulf %20, %19 : vector<16x128xf32>
    %22 = math.tanh %21 : vector<16x128xf32>
    %cst_12 = arith.constant 1.000000e+00 : f32
    %23 = vector.broadcast %cst_12 : f32 to vector<16x128xf32>
    %24 = arith.addf %23, %22 : vector<16x128xf32>
    %25 = arith.mulf %14, %24 : vector<16x128xf32>
    %c0_13 = arith.constant 0 : index
    %c0_14 = arith.constant 0 : index
    %c0_15 = arith.constant 0 : index
    %26 = vector.load %arg7[%c0_13, %c0_14, %c0_15] : memref<1x128x32xf32, #tpu.memory_space<vmem>>, vector<1x128x32xf32>
    %27 = vector.shape_cast %26 : vector<1x128x32xf32> to vector<128x32xf32>
    %cst_16 = arith.constant dense<0.000000e+00> : vector<16x32xf32>
    %28 = tpu.matmul %25, %27, %cst_16 {dimension_numbers = #tpu.dot_dimension_numbers<[1], [0], [0], [1], [0, 0, 1, 1], [], []>} : vector<16x128xf32>, vector<128x32xf32>, vector<16x32xf32> -> vector<16x32xf32>
    %c0_17 = arith.constant 0 : index
    %c0_18 = arith.constant 0 : index
    %c0_19 = arith.constant 0 : index
    %29 = vector.load %arg8[%c0_17, %c0_18, %c0_19] : memref<1x1x32xf32, #tpu.memory_space<vmem>>, vector<1x1x32xf32>
    %30 = vector.shape_cast %29 : vector<1x1x32xf32> to vector<1x32xf32>
    %c0_i32_20 = arith.constant 0 : i32
    %31 = arith.cmpi eq, %arg2, %c0_i32_20 : i32
    %32 = arith.extui %31 : i1 to i32
    %33 = arith.sitofp %32 : i32 to f32
    %34 = vector.broadcast %33 : f32 to vector<1x32xf32>
    %35 = arith.mulf %30, %34 : vector<1x32xf32>
    %36 = vector.broadcast %35 : vector<1x32xf32> to vector<16x32xf32>
    %37 = arith.addf %28, %36 : vector<16x32xf32>
    %c0_21 = arith.constant 0 : index
    %c0_22 = arith.constant 0 : index
    %38 = vector.load %arg13[%c0_21, %c0_22] : memref<16x1xi32, #tpu.memory_space<vmem>>, vector<16x1xi32>
    %39 = vector.broadcast %arg1 : i32 to vector<16x1xi32>
    %40 = arith.cmpi eq, %38, %39 : vector<16x1xi32>
    %41 = arith.extui %40 : vector<16x1xi1> to vector<16x1xi32>
    %42 = arith.sitofp %41 : vector<16x1xi32> to vector<16x1xf32>
    %cst_23 = arith.constant dense<0.000000e+00> : vector<16xf32>
    %43 = vector.multi_reduction <add>, %42, %cst_23 [1] : vector<16x1xf32> to vector<16xf32>
    %44 = vector.shape_cast %43 : vector<16xf32> to vector<16x1xf32>
    %cst_24 = arith.constant 0.000000e+00 : f32
    %45 = vector.broadcast %cst_24 : f32 to vector<16x1xf32>
    %46 = arith.cmpf ogt, %44, %45 : vector<16x1xf32>
    %c0_25 = arith.constant 0 : index
    %c0_26 = arith.constant 0 : index
    %47 = vector.load %arg12[%c0_25, %c0_26] : memref<16x1xf32, #tpu.memory_space<vmem>>, vector<16x1xf32>
    %cst_27 = arith.constant 0.000000e+00 : f32
    %48 = vector.broadcast %cst_27 : f32 to vector<16x1xf32>
    %49 = arith.select %46, %47, %48 : vector<16x1xi1>, vector<16x1xf32>
    %c0_28 = arith.constant 0 : index
    %c0_29 = arith.constant 0 : index
    %50 = vector.load %arg11[%c0_28, %c0_29] : memref<16x32xf32, #tpu.memory_space<vmem>>, vector<16x32xf32>
    %51 = vector.broadcast %49 : vector<16x1xf32> to vector<16x32xf32>
    %52 = arith.mulf %37, %51 : vector<16x32xf32>
    %53 = arith.addf %50, %52 : vector<16x32xf32>
    %c0_30 = arith.constant 0 : index
    %c0_31 = arith.constant 0 : index
    %54 = vector.load %arg11[%c0_30, %c0_31] : memref<16x32xf32, #tpu.memory_space<vmem>>, vector<16x32xf32>
    tpu.vector_store %arg11[%c0_30, %c0_31], %53 {strides = array<i32>} : memref<16x32xf32, #tpu.memory_space<vmem>>, vector<16x32xf32>,
    %c3_i32 = arith.constant 3 : i32
    %55 = arith.cmpi eq, %arg1, %c3_i32 : i32
    %c0_i32_32 = arith.constant 0 : i32
    %56 = arith.cmpi eq, %arg2, %c0_i32_32 : i32
    %57 = arith.andi %55, %56 : i1
    %58 = arith.extui %57 : i1 to i32
    %c0_i32_33 = arith.constant 0 : i32
    %59 = arith.cmpi ne, %58, %c0_i32_33 : i32
    scf.if %59 {
      %c0_34 = arith.constant 0 : index
      %c0_35 = arith.constant 0 : index
      %60 = vector.load %arg11[%c0_34, %c0_35] : memref<16x32xf32, #tpu.memory_space<vmem>>, vector<16x32xf32>
      %c0_36 = arith.constant 0 : index
      %c0_37 = arith.constant 0 : index
      %61 = vector.load %arg9[%c0_36, %c0_37] : memref<16x32xf32, #tpu.memory_space<vmem>>, vector<16x32xf32>
      tpu.vector_store %arg9[%c0_36, %c0_37], %60 {strides = array<i32>} : memref<16x32xf32, #tpu.memory_space<vmem>>, vector<16x32xf32>,
    } else {
    }
    return
  }
  func.func @transform_0(%arg0: i32, %arg1: i32, %arg2: i32) -> (i32, i32) {
    %c0_i32 = arith.constant 0 : i32
    %c0_i32_0 = arith.constant 0 : i32
    return %arg0, %c0_i32 : i32, i32
  }
  func.func @transform_1(%arg0: i32, %arg1: i32, %arg2: i32) -> (i32, i32) {
    %c0_i32 = arith.constant 0 : i32
    %c0_i32_0 = arith.constant 0 : i32
    %c0_i32_1 = arith.constant 0 : i32
    return %c0_i32, %c0_i32_0 : i32, i32
  }
  func.func @transform_2(%arg0: i32, %arg1: i32, %arg2: i32) -> (i32, i32, i32) {
    %c0_i32 = arith.constant 0 : i32
    %c0_i32_0 = arith.constant 0 : i32
    return %arg1, %c0_i32, %arg2 : i32, i32, i32
  }
  func.func @transform_3(%arg0: i32, %arg1: i32, %arg2: i32) -> (i32, i32, i32) {
    %c0_i32 = arith.constant 0 : i32
    %c0_i32_0 = arith.constant 0 : i32
    return %arg1, %c0_i32, %arg2 : i32, i32, i32
  }
  func.func @transform_4(%arg0: i32, %arg1: i32, %arg2: i32) -> (i32, i32, i32) {
    %c0_i32 = arith.constant 0 : i32
    %c0_i32_0 = arith.constant 0 : i32
    return %arg1, %arg2, %c0_i32 : i32, i32, i32
  }
  func.func @transform_5(%arg0: i32, %arg1: i32, %arg2: i32) -> (i32, i32, i32) {
    %c0_i32 = arith.constant 0 : i32
    %c0_i32_0 = arith.constant 0 : i32
    %c0_i32_1 = arith.constant 0 : i32
    return %arg1, %c0_i32, %c0_i32_0 : i32, i32, i32
  }
  func.func @transform_6(%arg0: i32, %arg1: i32, %arg2: i32) -> (i32, i32) {
    %c0_i32 = arith.constant 0 : i32
    %c0_i32_0 = arith.constant 0 : i32
    return %arg0, %c0_i32 : i32, i32
  }
  func.func @transform_7(%arg0: i32, %arg1: i32, %arg2: i32) -> (i32, i32) {
    %c0_i32 = arith.constant 0 : i32
    %c0_i32_0 = arith.constant 0 : i32
    return %arg0, %c0_i32 : i32, i32
  }
}

</mosaic_0001>

<llo_original>
// kernel: tpu_custom_call.1
$region0: #{tpu_custom_call.1}
  #allocation0 [shape = 'u32[]', space=smem, size = 0x4, offset = 0x4, fixed_abs, tag = 'smem constant byte address 0x4 - core index']
  #allocation1 [shape = 'u32[72,128]{1,0:T(1,128)}', space=vmem, size = 0x9000, scoped, tag = 'internal scratch']
  #allocation2 [shape = 'f32[16,32]{1,0:T(8,128)}', space=vmem, size = 0x2000, scoped, tag = 'scratch operand']
  #allocation3 [shape = 'f32[16,1]{1,0:T(8,128)}', space=vmem, size = 0x2000, scoped, tag = 'scratch operand']
  #allocation4 [shape = 's32[16,1]{1,0:T(8,128)}', space=vmem, size = 0x2000, scoped, tag = 'scratch operand']
  %s0 = inlined_call_operand.vmem [shape: f32[16,32], index: 0, kind: input, shape index: {}]
  %s1 = inlined_call_operand.vmem [shape: f32[32,128], index: 1, kind: input, shape index: {}]
  %s2 = inlined_call_operand.vmem [shape: f32[4,32,128], index: 2, kind: input, shape index: {}]
  %s3 = inlined_call_operand.vmem [shape: f32[4,1,128], index: 3, kind: input, shape index: {}]
  %s4 = inlined_call_operand.vmem [shape: f32[4,128,32], index: 4, kind: input, shape index: {}]
  %s5 = inlined_call_operand.vmem [shape: f32[4,1,32], index: 5, kind: input, shape index: {}]
  %s6 = inlined_call_operand.hbm [shape: f32[16,32], index: 6, kind: output, shape index: {0}]
  %s7 = inlined_call_operand.hbm [shape: f32[16,128], index: 7, kind: output, shape index: {1}]
  %8 = xla_tuple %s6, %s7
  %s9 = sld [smem:[#allocation0]]
  $region73: #{tpu_custom_call.1} parent=0
    _
  %s11 = ssub.s32 1, %s9
  %s12 = scalar_select 0, %s11, %s9
  $region1: #{tpu_custom_call.1} parent=0
    #allocation5 [shape = 'u8[8192]{0}', space=vmem, size = 0x2000, scoped, tag = 'output window, operand 0, single buffered']
    #allocation6 [shape = 's32[2]{0}', space=sflag, size = 0x8, scoped, tag = 'scoped memory for tpu_custom_call.1']
    #allocation7 [shape = 'u8[8192]{0}', space=vmem, size = 0x2000, scoped, tag = 'output window, operand 1, single buffered']
    #allocation8 [shape = 's32[1]{0}', space=sflag, size = 0x4, scoped, tag = 'scoped memory for tpu_custom_call.1']
    %13 = vsyncpa [#allocation6], 0
    %14 = vsyncpa [#allocation8], 0
    loop: start=0, step=1, limit=6
    $region2: #{tpu_custom_call.1} parent=1 // loop_pre_header
      _
    $region3: #{tpu_custom_call.1} parent=1 // loop_header
      %s16 = sphi 0, %s20
      %p17 = scmp.ge.s32.totalorder %s16, 6
      %s23 = sphi 0, %s42
      %s24 = sphi 0, %s38
      %s25 = sphi 0, %s34
      %s26 = sphi 0, %s23
      %s27 = sphi 0, %s24
      %s28 = sphi 0, %s25
      %s29 = sphi 0, %s26
      %s30 = sphi 0, %s27
      %s31 = sphi 0, %s28
      %s45 = sphi 0, %s47
      %s48 = sphi 0, %s45
      %s49 = sphi 0, %s48
      %s65 = sphi 0, %s49
      %s69 = sphi 0, %s69
      %s71 = sphi 0, %s69
      %s72 = sphi 0, %s71
      %s86 = sphi 0, %s72
      %s94 = sphi 0, %s96
      %s97 = sphi 0, %s94
      %s98 = sphi 0, %s97
      %s114 = sphi 0, %s98
      %s122 = sphi 0, %s124
      %s125 = sphi 0, %s122
      %s126 = sphi 0, %s125
      %s142 = sphi 0, %s126
      %s150 = sphi 0, %s152
      %s153 = sphi 0, %s150
      %s154 = sphi 0, %s153
      %s170 = sphi 0, %s154
      %s176 = sphi 0, %s178
      %s179 = sphi 0, %s176
      %s180 = sphi 0, %s179
      %s196 = sphi 0, %s180
      %s202 = sphi 0, %s204
      %s205 = sphi 0, %s202
      %s206 = sphi 0, %s205
      %s222 = sphi 0, %s206
      %s228 = sphi 0, %s230
      %s231 = sphi 0, %s228
      %s232 = sphi 0, %s231
      %s248 = sphi 0, %s232
    $region4: #{tpu_custom_call.1} parent=1 // loop_header_branch
      %19 = sbr.rel (%p17) target = $region8
    $region5: #{tpu_custom_call.1} parent=1 // loop_body
      %s21 = ssub.s32 %s16, 1
      %s22 = ssub.s32 %s16, 2
      %s32 = sadd.s32 1, %s25
      %p33 = scmp.ge.s32.totalorder %s32, 1
      %s34 = scalar_select %p33, 0, %s32
      %s35 = sadd.s32 1, %s24
      %s36 = scalar_select %p33, %s35, %s24
      %p37 = scmp.ge.s32.totalorder %s36, 4
      %s38 = scalar_select %p37, 0, %s36
      %s39 = sadd.s32 1, %s23
      %s40 = scalar_select %p37, %s39, %s23
      %p41 = scmp.ge.s32.totalorder %s40, 1
      %s42 = scalar_select %p41, 0, %s40
      %s43 = ssub.s32 %s23, %s42
      %p44 = scmp.eq.s32.totalorder %s43, 0
      %s46 = sadd.s32 %s45, 1
      %s47 = scalar_select %p44, %s45, %s46
      %p50 = pneg %p44
      %p51 = scmp.eq.s32.totalorder %s16, 3
      %p52 = por %p50, %p51
      %p53 = scmp.ne.s32.totalorder %s45, %s48
      %p54 = scmp.eq.s32.totalorder %s16, 0
      %p55 = por %p53, %p54
      %p56 = scmp.ne.s32.totalorder %s45, %s48
      %p57 = scmp.eq.s32.totalorder %s21, 3
      %p58 = por %p56, %p57
      %p59 = scmp.ne.s32.totalorder %s48, %s49
      %p60 = scmp.eq.s32.totalorder %s21, 0
      %p61 = por %p59, %p60
      %p62 = scmp.ne.s32.totalorder %s48, %s49
      %p63 = scmp.eq.s32.totalorder %s22, 3
      %p64 = por %p62, %p63
      %p66 = scmp.ne.s32.totalorder %s49, %s65
      %p67 = scmp.eq.s32.totalorder %s22, 0
      %p68 = por %p66, %p67
      %s70 = sadd.s32 %s69, 1
      %p73 = scmp.eq.s32.totalorder %s16, 3
      %p74 = scmp.ne.s32.totalorder %s69, %s71
      %p75 = scmp.eq.s32.totalorder %s16, 0
      %p76 = por %p74, %p75
      %p77 = scmp.ne.s32.totalorder %s69, %s71
      %p78 = scmp.eq.s32.totalorder %s21, 3
      %p79 = por %p77, %p78
      %p80 = scmp.ne.s32.totalorder %s71, %s72
      %p81 = scmp.eq.s32.totalorder %s21, 0
      %p82 = por %p80, %p81
      %p83 = scmp.ne.s32.totalorder %s71, %s72
      %p84 = scmp.eq.s32.totalorder %s22, 3
      %p85 = por %p83, %p84
      %p87 = scmp.ne.s32.totalorder %s72, %s86
      %p88 = scmp.eq.s32.totalorder %s22, 0
      %p89 = por %p87, %p88
      %s90 = ssub.s32 %s24, %s38
      %s91 = ssub.s32 %s25, %s34
      %s92 = sor.u32 %s90, %s91
      %p93 = scmp.eq.s32.totalorder %s92, 0
      %s95 = sadd.s32 %s94, 1
      %s96 = scalar_select %p93, %s94, %s95
      %p99 = pneg %p93
      %p100 = scmp.eq.s32.totalorder %s16, 3
      %p101 = por %p99, %p100
      %p102 = scmp.ne.s32.totalorder %s94, %s97
      %p103 = scmp.eq.s32.totalorder %s16, 0
      %p104 = por %p102, %p103
      %p105 = scmp.ne.s32.totalorder %s94, %s97
      %p106 = scmp.eq.s32.totalorder %s21, 3
      %p107 = por %p105, %p106
      %p108 = scmp.ne.s32.totalorder %s97, %s98
      %p109 = scmp.eq.s32.totalorder %s21, 0
      %p110 = por %p108, %p109
      %p111 = scmp.ne.s32.totalorder %s97, %s98
      %p112 = scmp.eq.s32.totalorder %s22, 3
      %p113 = por %p111, %p112
      %p115 = scmp.ne.s32.totalorder %s98, %s114
      %p116 = scmp.eq.s32.totalorder %s22, 0
      %p117 = por %p115, %p116
      %s118 = ssub.s32 %s24, %s38
      %s119 = ssub.s32 %s25, %s34
      %s120 = sor.u32 %s118, %s119
      %p121 = scmp.eq.s32.totalorder %s120, 0
      %s123 = sadd.s32 %s122, 1
      %s124 = scalar_select %p121, %s122, %s123
      %p127 = pneg %p121
      %p128 = scmp.eq.s32.totalorder %s16, 3
      %p129 = por %p127, %p128
      %p130 = scmp.ne.s32.totalorder %s122, %s125
      %p131 = scmp.eq.s32.totalorder %s16, 0
      %p132 = por %p130, %p131
      %p133 = scmp.ne.s32.totalorder %s122, %s125
      %p134 = scmp.eq.s32.totalorder %s21, 3
      %p135 = por %p133, %p134
      %p136 = scmp.ne.s32.totalorder %s125, %s126
      %p137 = scmp.eq.s32.totalorder %s21, 0
      %p138 = por %p136, %p137
      %p139 = scmp.ne.s32.totalorder %s125, %s126
      %p140 = scmp.eq.s32.totalorder %s22, 3
      %p141 = por %p139, %p140
      %p143 = scmp.ne.s32.totalorder %s126, %s142
      %p144 = scmp.eq.s32.totalorder %s22, 0
      %p145 = por %p143, %p144
      %s146 = ssub.s32 %s24, %s38
      %s147 = ssub.s32 %s25, %s34
      %s148 = sor.u32 %s146, %s147
      %p149 = scmp.eq.s32.totalorder %s148, 0
      %s151 = sadd.s32 %s150, 1
      %s152 = scalar_select %p149, %s150, %s151
      %p155 = pneg %p149
      %p156 = scmp.eq.s32.totalorder %s16, 3
      %p157 = por %p155, %p156
      %p158 = scmp.ne.s32.totalorder %s150, %s153
      %p159 = scmp.eq.s32.totalorder %s16, 0
      %p160 = por %p158, %p159
      %p161 = scmp.ne.s32.totalorder %s150, %s153
      %p162 = scmp.eq.s32.totalorder %s21, 3
      %p163 = por %p161, %p162
      %p164 = scmp.ne.s32.totalorder %s153, %s154
      %p165 = scmp.eq.s32.totalorder %s21, 0
      %p166 = por %p164, %p165
      %p167 = scmp.ne.s32.totalorder %s153, %s154
      %p168 = scmp.eq.s32.totalorder %s22, 3
      %p169 = por %p167, %p168
      %p171 = scmp.ne.s32.totalorder %s154, %s170
      %p172 = scmp.eq.s32.totalorder %s22, 0
      %p173 = por %p171, %p172
      %s174 = ssub.s32 %s24, %s38
      %p175 = scmp.eq.s32.totalorder %s174, 0
      %s177 = sadd.s32 %s176, 1
      %s178 = scalar_select %p175, %s176, %s177
      %p181 = pneg %p175
      %p182 = scmp.eq.s32.totalorder %s16, 3
      %p183 = por %p181, %p182
      %p184 = scmp.ne.s32.totalorder %s176, %s179
      %p185 = scmp.eq.s32.totalorder %s16, 0
      %p186 = por %p184, %p185
      %p187 = scmp.ne.s32.totalorder %s176, %s179
      %p188 = scmp.eq.s32.totalorder %s21, 3
      %p189 = por %p187, %p188
      %p190 = scmp.ne.s32.totalorder %s179, %s180
      %p191 = scmp.eq.s32.totalorder %s21, 0
      %p192 = por %p190, %p191
      %p193 = scmp.ne.s32.totalorder %s179, %s180
      %p194 = scmp.eq.s32.totalorder %s22, 3
      %p195 = por %p193, %p194
      %p197 = scmp.ne.s32.totalorder %s180, %s196
      %p198 = scmp.eq.s32.totalorder %s22, 0
      %p199 = por %p197, %p198
      %s200 = ssub.s32 %s23, %s42
      %p201 = scmp.eq.s32.totalorder %s200, 0
      %s203 = sadd.s32 %s202, 1
      %s204 = scalar_select %p201, %s202, %s203
      %p207 = pneg %p201
      %p208 = scmp.eq.s32.totalorder %s16, 3
      %p209 = por %p207, %p208
      %p210 = scmp.ne.s32.totalorder %s202, %s205
      %p211 = scmp.eq.s32.totalorder %s16, 0
      %p212 = por %p210, %p211
      %p213 = scmp.ne.s32.totalorder %s202, %s205
      %p214 = scmp.eq.s32.totalorder %s21, 3
      %p215 = por %p213, %p214
      %p216 = scmp.ne.s32.totalorder %s205, %s206
      %p217 = scmp.eq.s32.totalorder %s21, 0
      %p218 = por %p216, %p217
      %p219 = scmp.ne.s32.totalorder %s205, %s206
      %p220 = scmp.eq.s32.totalorder %s22, 3
      %p221 = por %p219, %p220
      %p223 = scmp.ne.s32.totalorder %s206, %s222
      %p224 = scmp.eq.s32.totalorder %s22, 0
      %p225 = por %p223, %p224
      %s226 = ssub.s32 %s23, %s42
      %p227 = scmp.eq.s32.totalorder %s226, 0
      %s229 = sadd.s32 %s228, 1
      %s230 = scalar_select %p227, %s228, %s229
      %p233 = pneg %p227
      %p234 = scmp.eq.s32.totalorder %s16, 3
      %p235 = por %p233, %p234
      %p236 = scmp.ne.s32.totalorder %s228, %s231
      %p237 = scmp.eq.s32.totalorder %s16, 0
      %p238 = por %p236, %p237
      %p239 = scmp.ne.s32.totalorder %s228, %s231
      %p240 = scmp.eq.s32.totalorder %s21, 3
      %p241 = por %p239, %p240
      %p242 = scmp.ne.s32.totalorder %s231, %s232
      %p243 = scmp.eq.s32.totalorder %s21, 0
      %p244 = por %p242, %p243
      %p245 = scmp.ne.s32.totalorder %s231, %s232
      %p246 = scmp.eq.s32.totalorder %s22, 3
      %p247 = por %p245, %p246
      %p249 = scmp.ne.s32.totalorder %s232, %s248
      %p250 = scmp.eq.s32.totalorder %s22, 0
      %p251 = por %p249, %p250
      %p252 = scmp.le.s32.totalorder 1, %s16
      %p253 = scmp.lt.s32.totalorder %s16, 5
      %p254 = pnand %p252, %p253
      %p255 = pneg %p254
      // Predicated region
      $region9: #{tpu_custom_call.1} parent=5 // pred_check
        _
      $region10: #{tpu_custom_call.1} parent=5 // pred_check_branch
        %257 = sbr.rel (%p254) target = $region12
      $region11: #{tpu_custom_call.1} parent=5 // pred_region
        %s258 = ssub.s32 %s16, 1
        // Predicated region
        $region13: #{tpu_custom_call.1} parent=11 // pred_check
          %p259 = pneg %p61
        $region14: #{tpu_custom_call.1} parent=11 // pred_check_branch
          %261 = sbr.rel (%p259) target = $region16
        $region15: #{tpu_custom_call.1} parent=11 // pred_region
          %s262 = smul.u32 2, %s26
          %p263 = scmp.lt.s32.totalorder %s262, 1
          %s264 = scalar_select %p263, %s262, 1
          %s265 = smul.addr %s264, 8
          %s266 = scalar_lea.vmem %s0, %s265
          %s267 = smul.u32 2, %s26
        $region16: #{tpu_custom_call.1} parent=11 // pred_fallthru
          _
        // Predicated region
        $region17: #{tpu_custom_call.1} parent=11 // pred_check
          %p268 = pneg %p82
        $region18: #{tpu_custom_call.1} parent=11 // pred_check_branch
          %270 = sbr.rel (%p268) target = $region20
        $region19: #{tpu_custom_call.1} parent=11 // pred_region
          _
        $region20: #{tpu_custom_call.1} parent=11 // pred_fallthru
          _
      $region12: #{tpu_custom_call.1} parent=5 // pred_fallthru
        _
      %p271 = scmp.lt.s32.totalorder %s16, 4
      // Predicated region
      $region21: #{tpu_custom_call.1} parent=5 // pred_check
        %p272 = pneg %p271
      $region22: #{tpu_custom_call.1} parent=5 // pred_check_branch
        %274 = sbr.rel (%p272) target = $region24
      $region23: #{tpu_custom_call.1} parent=5 // pred_region
        // Predicated region
        $region25: #{tpu_custom_call.1} parent=23 // pred_check
          %p275 = pneg %p104
        $region26: #{tpu_custom_call.1} parent=23 // pred_check_branch
          %277 = sbr.rel (%p275) target = $region28
        $region27: #{tpu_custom_call.1} parent=23 // pred_region
          %p278 = scmp.lt.s32.totalorder %s24, 3
          %s279 = scalar_select %p278, %s24, 3
          %p280 = scmp.lt.s32.totalorder %s25, 0
          %s281 = scalar_select %p280, %s25, 0
          %s282 = smul.addr %s279, 4
          %s283 = sadd.s32 %s281, %s282
          %s284 = smul.addr %s283, 8
          %s285 = scalar_lea.vmem %s2, %s284
        $region28: #{tpu_custom_call.1} parent=23 // pred_fallthru
          _
        // Predicated region
        $region29: #{tpu_custom_call.1} parent=23 // pred_check
          %p286 = pneg %p132
        $region30: #{tpu_custom_call.1} parent=23 // pred_check_branch
          %288 = sbr.rel (%p286) target = $region32
        $region31: #{tpu_custom_call.1} parent=23 // pred_region
          %p289 = scmp.lt.s32.totalorder %s24, 3
          %s290 = scalar_select %p289, %s24, 3
          %p291 = scmp.lt.s32.totalorder %s25, 0
          %s292 = scalar_select %p291, %s25, 0
          %s293 = sadd.s32 %s292, %s290
          %s294 = scalar_lea.vmem %s3, %s293
        $region32: #{tpu_custom_call.1} parent=23 // pred_fallthru
          _
        // Predicated region
        $region33: #{tpu_custom_call.1} parent=23 // pred_check
          %p295 = pneg %p160
        $region34: #{tpu_custom_call.1} parent=23 // pred_check_branch
          %297 = sbr.rel (%p295) target = $region36
        $region35: #{tpu_custom_call.1} parent=23 // pred_region
          %s298 = smul.u32 16, %s25
          %p299 = scmp.lt.s32.totalorder %s24, 3
          %s300 = scalar_select %p299, %s24, 3
          %p301 = scmp.lt.s32.totalorder %s298, 15
          %s302 = scalar_select %p301, %s298, 15
          %s303 = smul.addr %s300, 16
          %s304 = sadd.s32 %s302, %s303
          %s305 = smul.addr %s304, 8
          %s306 = scalar_lea.vmem %s4, %s305
          %s307 = smul.u32 16, %s25
        $region36: #{tpu_custom_call.1} parent=23 // pred_fallthru
          _
        // Predicated region
        $region37: #{tpu_custom_call.1} parent=23 // pred_check
          %p308 = pneg %p186
        $region38: #{tpu_custom_call.1} parent=23 // pred_check_branch
          %310 = sbr.rel (%p308) target = $region40
        $region39: #{tpu_custom_call.1} parent=23 // pred_region
          %p311 = scmp.lt.s32.totalorder %s24, 3
          %s312 = scalar_select %p311, %s24, 3
          %s313 = scalar_lea.vmem %s5, %s312
        $region40: #{tpu_custom_call.1} parent=23 // pred_fallthru
          _
      $region24: #{tpu_custom_call.1} parent=5 // pred_fallthru
        _
      %p314 = scmp.le.s32.totalorder 1, %s16
      %p315 = scmp.lt.s32.totalorder %s16, 5
      %p316 = pnand %p314, %p315
      %p317 = pneg %p316
      // Predicated region
      $region41: #{tpu_custom_call.1} parent=5 // pred_check
        _
      $region42: #{tpu_custom_call.1} parent=5 // pred_check_branch
        %319 = sbr.rel (%p316) target = $region44
      $region43: #{tpu_custom_call.1} parent=5 // pred_region
        %s320 = ssub.s32 %s16, 1
        %s321 = smul.u32 2, %s26
        %p322 = scmp.lt.s32.totalorder %s321, 1
        %s323 = scalar_select %p322, %s321, 1
        %s324 = smul.addr %s323, 8
        %s325 = scalar_lea.vmem %s0, %s324
        %p326 = pneg %p61
        %p327 = pneg %p58
        %p328 = pneg %p82
        %p329 = pneg %p79
        %p330 = scmp.lt.s32.totalorder %s27, 3
        %s331 = scalar_select %p330, %s27, 3
        %p332 = scmp.lt.s32.totalorder %s28, 0
        %s333 = scalar_select %p332, %s28, 0
        %s334 = smul.addr %s331, 4
        %s335 = sadd.s32 %s333, %s334
        %s336 = smul.addr %s335, 8
        %s337 = scalar_lea.vmem %s2, %s336
        %p338 = pneg %p110
        %p339 = pneg %p107
        %p340 = scmp.lt.s32.totalorder %s27, 3
        %s341 = scalar_select %p340, %s27, 3
        %p342 = scmp.lt.s32.totalorder %s28, 0
        %s343 = scalar_select %p342, %s28, 0
        %s344 = sadd.s32 %s343, %s341
        %s345 = scalar_lea.vmem %s3, %s344
        %p346 = pneg %p138
        %p347 = pneg %p135
        %s348 = smul.u32 16, %s28
        %p349 = scmp.lt.s32.totalorder %s27, 3
        %s350 = scalar_select %p349, %s27, 3
        %p351 = scmp.lt.s32.totalorder %s348, 15
        %s352 = scalar_select %p351, %s348, 15
        %s353 = smul.addr %s350, 16
        %s354 = sadd.s32 %s352, %s353
        %s355 = smul.addr %s354, 8
        %s356 = scalar_lea.vmem %s4, %s355
        %p357 = pneg %p166
        %p358 = pneg %p163
        %p359 = scmp.lt.s32.totalorder %s27, 3
        %s360 = scalar_select %p359, %s27, 3
        %s361 = scalar_lea.vmem %s5, %s360
        %p362 = pneg %p192
        %p363 = pneg %p189
        %p364 = pneg %p218
        %p365 = pneg %p215
        %p366 = pneg %p244
        %p367 = pneg %p241
        %s368 = smul.u32 2, %s26
        %p369 = scmp.lt.s32.totalorder %s368, 1
        %s370 = scalar_select %p369, %s368, 1
        %s371 = smul.addr %s370, 8
        %s372 = scalar_lea.vmem %s0, %s371
        %s373 = smul.u32 2, %s26
        %p374 = scmp.lt.s32.totalorder %s27, 3
        %s375 = scalar_select %p374, %s27, 3
        %p376 = scmp.lt.s32.totalorder %s28, 0
        %s377 = scalar_select %p376, %s28, 0
        %s378 = smul.addr %s375, 4
        %s379 = sadd.s32 %s377, %s378
        %s380 = smul.addr %s379, 8
        %s381 = scalar_lea.vmem %s2, %s380
        %p382 = scmp.lt.s32.totalorder %s27, 3
        %s383 = scalar_select %p382, %s27, 3
        %p384 = scmp.lt.s32.totalorder %s28, 0
        %s385 = scalar_select %p384, %s28, 0
        %s386 = sadd.s32 %s385, %s383
        %s387 = scalar_lea.vmem %s3, %s386
        %s388 = smul.u32 16, %s28
        %p389 = scmp.lt.s32.totalorder %s27, 3
        %s390 = scalar_select %p389, %s27, 3
        %p391 = scmp.lt.s32.totalorder %s388, 15
        %s392 = scalar_select %p391, %s388, 15
        %s393 = smul.addr %s390, 16
        %s394 = sadd.s32 %s392, %s393
        %s395 = smul.addr %s394, 8
        %s396 = scalar_lea.vmem %s4, %s395
        %s397 = smul.u32 16, %s28
        %p398 = scmp.lt.s32.totalorder %s27, 3
        %s399 = scalar_select %p398, %s27, 3
        %s400 = scalar_lea.vmem %s5, %s399
        %s401 = smul.u32 2, %s26
        %s402 = smul.u32 2, %s26
        %p403 = scmp.eq.s32.totalorder %s27, 0
        %p404 = scmp.eq.s32.totalorder %s28, 0
        %p405 = pnand %p403, %p404
        %p406 = pneg %p405
        // Predicated region
        $region45: #{tpu_custom_call.1} parent=43 // pred_check
          _
        $region46: #{tpu_custom_call.1} parent=43 // pred_check_branch
          %408 = sbr.rel (%p405) target = $region48
        $region47: #{tpu_custom_call.1} parent=43 // pred_region
          %v409 = vld [vmem:[%s372] sm:$0xff]
          %v410 = vld [vmem:[%s372 + $0x8] sm:$0xff]
          %v411 = vld [vmem:[%s1] sm:$0xff]
          %v412 = vld [vmem:[%s1 + $0x8] sm:$0xff]
          %v413 = vld [vmem:[%s1 + $0x10] sm:$0xff]
          %v414 = vld [vmem:[%s1 + $0x18] sm:$0xff]
          %vm415 = vcmask 261120
          %v417 = vsel %vm415, %v409, 0
          %v420 = vsel %vm415, %v410, 0
          %422 = vmatpush.msra.mxu0 0.0
          %423 = vmatpush.msra.mxu0 0.0
          %424 = vmatpush.msra.mxu0 0.0
          %425 = vmatpush.msra.mxu0 0.0
          %426 = vmatpush.msra.mxu0 0.0
          %427 = vmatpush.msra.mxu0 0.0
          %428 = vmatpush.msra.mxu0 0.0
          %429 = vmatpush.msra.mxu0 0.0
          %430 = vmatpush.msra.mxu0 0.0
          %431 = vmatpush.msra.mxu0 0.0
          %432 = vmatpush.msra.mxu0 0.0
          %433 = vmatpush.msra.mxu0 0.0
          %434 = vmatpush.msra.mxu0 %v414
          %435 = vmatpush.msra.mxu0 %v413
          %436 = vmatpush.msra.mxu0 %v412
          %437 = vmatpush.msra.mxu0 %v411
          %438 = vmatmul.f32.gmra.mxu0 %v417
          %v439 = vpop.f32.mrf.mxu0
          %v440 = vadd.f32 0.0, %v439
          %441 = vmatmul.f32.gmra.mxu0 %v420
          %v442 = vpop.f32.mrf.mxu0
          %v443 = vadd.f32 0.0, %v442
          %444 = vdwg.mxu0
          %445 = vst [vmem:[#allocation7] sm:$0xff] %v440
          %446 = vst [vmem:[#allocation7 + $0x8] sm:$0xff] %v443
          %v447 = vlaneseq
          %v448 = vand.u32 %v447, 127
          %vm449 = vcmp.lt.s32.totalorder %v448, 4
          %v450 = vsel %vm449, %v440, -inf
          %v451 = vsel %vm449, %v443, -inf
          %452 = vmax.xlane.f32.xlu0 %v450
          %v453 = vpop.xlane.xlu0 %452
          %454 = vmax.xlane.f32.xlu0 %v451
          %v455 = vpop.xlane.xlu0 %454
          %v456 = vsub.f32 %v450, %v453
          %v457 = vsub.f32 %v451, %v455
          %v458 = vmul.f32 %v456, 1.442695
          %v459 = vpow.pop %v458
          %v460 = vmul.f32 %v457, 1.442695
          %v461 = vpow.pop %v460
          %462 = vadd.xlane.f32.xlu0 %v459
          %v463 = vpop.xlane.xlu0 %462
          %464 = vadd.xlane.f32.xlu0 %v461
          %v465 = vpop.xlane.xlu0 %464
          %v466 = vrcp.pop %v463
          %v467 = vmul.f32 %v463, %v466
          %v468 = vsub.f32 1.0, %v467
          %v469 = vmul.f32 %v466, %v468
          %v470 = vadd.f32 %v466, %v469
          %vm471 = vweird.f32 %v463
          %vm472 = vweird.f32 %v466
          %vm473 = vmor %vm471, %vm472
          %v474 = vsel %vm473, %v466, %v470
          %v475 = vand.u32 2147483647, %v463
          %vm476 = vcmp.eq.f32.partialorder %v475, 8.507059e+37
          %v477 = vand.u32 %v463, 2147483648
          %v478 = vor.u32 1.1754944e-38, %v477
          %v479 = vsel %vm476, %v478, %v474
          %v480 = vmul.f32 %v459, %v479
          %v481 = vrcp.pop %v465
          %v482 = vmul.f32 %v465, %v481
          %v483 = vsub.f32 1.0, %v482
          %v484 = vmul.f32 %v481, %v483
          %v485 = vadd.f32 %v481, %v484
          %vm486 = vweird.f32 %v465
          %vm487 = vweird.f32 %v481
          %vm488 = vmor %vm486, %vm487
          %v489 = vsel %vm488, %v481, %v485
          %v490 = vand.u32 2147483647, %v465
          %vm491 = vcmp.eq.f32.partialorder %v490, 8.507059e+37
          %v492 = vand.u32 %v465, 2147483648
          %v493 = vor.u32 1.1754944e-38, %v492
          %v494 = vsel %vm491, %v493, %v489
          %v495 = vmul.f32 %v461, %v494
          %496 = vmax.xlane.f32.xlu0 %v480
          %v497 = vpop.xlane.xlu0 %496
          %498 = vmax.xlane.f32.xlu0 %v495
          %v499 = vpop.xlane.xlu0 %498
          %vm500 = vcmp.eq.f32.partialorder %v480, %v497
          %vm501 = vcmp.eq.f32.partialorder %v495, %v499
          %v502 = vsel %vm500, %v448, 128
          %v503 = vsel %vm501, %v448, 128
          %v504 = vand.u32 %v502, 65535
          %v505 = vshra.s32 %v502, 16
          %v506 = vcvt.s32.f32 %v504
          %v507 = vcvt.s32.f32 %v505
          %508 = vmin.xlane.f32.xlu0 %v507
          %v509 = vpop.xlane.xlu0 %508
          %vm510 = vcmp.eq.f32.partialorder %v507, %v509
          %v511 = vsel %vm510, %v506, inf
          %512 = vmin.xlane.f32.xlu0 %v511
          %v513 = vpop.xlane.xlu0 %512
          %v514 = vcvt.f32.s32 %v513
          %v515 = vcvt.f32.s32 %v509
          %v516 = vshll.u32 %v515, 16
          %v517 = vadd.s32 %v516, %v514
          %v518 = vand.u32 %v503, 65535
          %v519 = vshra.s32 %v503, 16
          %v520 = vcvt.s32.f32 %v518
          %v521 = vcvt.s32.f32 %v519
          %522 = vmin.xlane.f32.xlu0 %v521
          %v523 = vpop.xlane.xlu0 %522
          %vm524 = vcmp.eq.f32.partialorder %v521, %v523
          %v525 = vsel %vm524, %v520, inf
          %526 = vmin.xlane.f32.xlu0 %v525
          %v527 = vpop.xlane.xlu0 %526
          %v528 = vcvt.f32.s32 %v527
          %v529 = vcvt.f32.s32 %v523
          %v530 = vshll.u32 %v529, 16
          %v531 = vadd.s32 %v530, %v528
          %v532 = vadd.f32 %v497, 0.0
          %v533 = vadd.f32 %v499, 0.0
          %vm534 = vcmask 7168
          %535 = vst.msk [vmem:[#allocation4] sm:$0xff] %vm534, %v517
          %536 = vst.msk [vmem:[#allocation4 + $0x8] sm:$0xff] %vm534, %v531
          %537 = vst.msk [vmem:[#allocation3] sm:$0xff] %vm534, %v532
          %538 = vst.msk [vmem:[#allocation3 + $0x8] sm:$0xff] %vm534, %v533
          %539 = vst.msk [vmem:[#allocation2] sm:$0xff] %vm415, 0.0
          %540 = vst.msk [vmem:[#allocation2 + $0x8] sm:$0xff] %vm415, 0.0
        $region48: #{tpu_custom_call.1} parent=43 // pred_fallthru
          _
        %v541 = vld [vmem:[%s372] sm:$0xff]
        %v542 = vld [vmem:[%s372 + $0x8] sm:$0xff]
        %v543 = vld [vmem:[%s381] sm:$0xff]
        %v544 = vld [vmem:[%s381 + $0x8] sm:$0xff]
        %v545 = vld [vmem:[%s381 + $0x10] sm:$0xff]
        %v546 = vld [vmem:[%s381 + $0x18] sm:$0xff]
        %v547 = vld [vmem:[%s387] sm:$0x1]
        %v549 = vperm.slane %v547, 0
        %vm551 = vcmask 261120
        %v553 = vsel %vm551, %v541, 0
        %v556 = vsel %vm551, %v542, 0
        %558 = vmatpush.msra.mxu0 0.0
        %559 = vmatpush.msra.mxu0 0.0
        %560 = vmatpush.msra.mxu0 0.0
        %561 = vmatpush.msra.mxu0 0.0
        %562 = vmatpush.msra.mxu0 0.0
        %563 = vmatpush.msra.mxu0 0.0
        %564 = vmatpush.msra.mxu0 0.0
        %565 = vmatpush.msra.mxu0 0.0
        %566 = vmatpush.msra.mxu0 0.0
        %567 = vmatpush.msra.mxu0 0.0
        %568 = vmatpush.msra.mxu0 0.0
        %569 = vmatpush.msra.mxu0 0.0
        %570 = vmatpush.msra.mxu0 %v546
        %571 = vmatpush.msra.mxu0 %v545
        %572 = vmatpush.msra.mxu0 %v544
        %573 = vmatpush.msra.mxu0 %v543
        %574 = vmatmul.f32.gmra.mxu0 %v553
        %v575 = vpop.f32.mrf.mxu0
        %v576 = vadd.f32 %v549, %v575
        %577 = vmatmul.f32.gmra.mxu0 %v556
        %v578 = vpop.f32.mrf.mxu0
        %v579 = vadd.f32 %v549, %v578
        %580 = vdwg.mxu0
        %v581 = vmul.f32 %v576, 0.5
        %v582 = vmul.f32 %v579, 0.5
        %v583 = vmul.f32 %v576, 0.044715
        %v584 = vmul.f32 %v579, 0.044715
        %v585 = vmul.f32 %v583, %v576
        %v586 = vmul.f32 %v584, %v579
        %v587 = vmul.f32 %v585, %v576
        %v588 = vmul.f32 %v586, %v579
        %v589 = vadd.f32 %v576, %v587
        %v590 = vadd.f32 %v579, %v588
        %v591 = vmul.f32 %v589, 0.7978846
        %v592 = vmul.f32 %v590, 0.7978846
        %v593 = vtanh.pop %v591
        %v594 = vtanh.pop %v592
        %v595 = vadd.f32 %v593, 1.0
        %v596 = vadd.f32 %v594, 1.0
        %v597 = vmul.f32 %v581, %v595
        %v598 = vmul.f32 %v582, %v596
        %v599 = vld [vmem:[%s396] sm:$0xff]
        %v600 = vld [vmem:[%s396 + $0x8] sm:$0xff]
        %v601 = vld [vmem:[%s396 + $0x10] sm:$0xff]
        %v602 = vld [vmem:[%s396 + $0x18] sm:$0xff]
        %v603 = vld [vmem:[%s396 + $0x20] sm:$0xff]
        %v604 = vld [vmem:[%s396 + $0x28] sm:$0xff]
        %v605 = vld [vmem:[%s396 + $0x30] sm:$0xff]
        %v606 = vld [vmem:[%s396 + $0x38] sm:$0xff]
        %v607 = vld [vmem:[%s396 + $0x40] sm:$0xff]
        %v608 = vld [vmem:[%s396 + $0x48] sm:$0xff]
        %v609 = vld [vmem:[%s396 + $0x50] sm:$0xff]
        %v610 = vld [vmem:[%s396 + $0x58] sm:$0xff]
        %v611 = vld [vmem:[%s396 + $0x60] sm:$0xff]
        %v612 = vld [vmem:[%s396 + $0x68] sm:$0xff]
        %v613 = vld [vmem:[%s396 + $0x70] sm:$0xff]
        %v614 = vld [vmem:[%s396 + $0x78] sm:$0xff]
        %v615 = vld [vmem:[%s400] sm:$0x1]
        %s616 = scalar_select %p404, 1, 0
        %s617 = scvt.s32.f32 %s616
        %v618 = vstv %s617
        %v619 = vmul.f32 %v615, %v618
        %v621 = vperm.slane %v619, 0
        %623 = vmatpush.msra.mxu0 %v614
        %624 = vmatpush.msra.mxu0 %v613
        %625 = vmatpush.msra.mxu0 %v612
        %626 = vmatpush.msra.mxu0 %v611
        %627 = vmatpush.msra.mxu0 %v610
        %628 = vmatpush.msra.mxu0 %v609
        %629 = vmatpush.msra.mxu0 %v608
        %630 = vmatpush.msra.mxu0 %v607
        %631 = vmatpush.msra.mxu0 %v606
        %632 = vmatpush.msra.mxu0 %v605
        %633 = vmatpush.msra.mxu0 %v604
        %634 = vmatpush.msra.mxu0 %v603
        %635 = vmatpush.msra.mxu0 %v602
        %636 = vmatpush.msra.mxu0 %v601
        %637 = vmatpush.msra.mxu0 %v600
        %638 = vmatpush.msra.mxu0 %v599
        %639 = vmatmul.f32.gmra.mxu0 %v597
        %v640 = vpop.f32.mrf.mxu0
        %v641 = vadd.f32 %v621, %v640
        %642 = vmatmul.f32.gmra.mxu0 %v598
        %v643 = vpop.f32.mrf.mxu0
        %v644 = vadd.f32 %v621, %v643
        %645 = vdwg.mxu0
        %v646 = vld [vmem:[#allocation4] sm:$0xff]
        %v647 = vld [vmem:[#allocation4 + $0x8] sm:$0xff]
        %v648 = vstv %s27
        %vm649 = vcmp.eq.s32.totalorder %v646, %v648
        %vm650 = vcmp.eq.s32.totalorder %v647, %v648
        %v651 = vsel %vm649, 1, 0
        %v652 = vsel %vm650, 1, 0
        %v653 = vcvt.s32.f32 %v651
        %v654 = vcvt.s32.f32 %v652
        %v655 = vadd.f32 %v653, 0.0
        %v656 = vadd.f32 %v654, 0.0
        %vm657 = vcmp.gt.f32.partialorder %v655, 0.0
        %vm658 = vcmp.gt.f32.partialorder %v656, 0.0
        %v659 = vld [vmem:[#allocation3] sm:$0xff]
        %v660 = vld [vmem:[#allocation3 + $0x8] sm:$0xff]
        %v661 = vsel %vm657, %v659, 0.0
        %v662 = vsel %vm658, %v660, 0.0
        %v663 = vld [vmem:[#allocation2] sm:$0xff]
        %v664 = vld [vmem:[#allocation2 + $0x8] sm:$0xff]
        %666 = vset.pattern.permute.xlu0 0
        %667 = vperm.xlu0 %666, %v661
        %v668 = vpop.permute.xlu0 %667
        %671 = vset.pattern.permute.xlu0 0
        %672 = vperm.xlu0 %671, %v662
        %v673 = vpop.permute.xlu0 %672
        %v675 = vmul.f32 %v641, %v668
        %v676 = vmul.f32 %v644, %v673
        %v677 = vadd.f32 %v663, %v675
        %v678 = vadd.f32 %v664, %v676
        %679 = vst.msk [vmem:[#allocation2] sm:$0xff] %vm551, %v677
        %680 = vst.msk [vmem:[#allocation2 + $0x8] sm:$0xff] %vm551, %v678
        %p681 = scmp.eq.s32.totalorder %s27, 3
        %p682 = pnand %p681, %p404
        %p683 = pneg %p682
        // Predicated region
        $region49: #{tpu_custom_call.1} parent=43 // pred_check
          _
        $region50: #{tpu_custom_call.1} parent=43 // pred_check_branch
          %685 = sbr.rel (%p682) target = $region52
        $region51: #{tpu_custom_call.1} parent=43 // pred_region
          %v686 = vld [vmem:[#allocation2] sm:$0xff]
          %v687 = vld [vmem:[#allocation2 + $0x8] sm:$0xff]
          %688 = vst.msk [vmem:[#allocation5] sm:$0xff] %vm551, %v686
          %689 = vst.msk [vmem:[#allocation5 + $0x8] sm:$0xff] %vm551, %v687
        $region52: #{tpu_custom_call.1} parent=43 // pred_fallthru
          _
        // Predicated region
        $region53: #{tpu_custom_call.1} parent=43 // pred_check
          %p690 = pneg %p215
        $region54: #{tpu_custom_call.1} parent=43 // pred_check_branch
          %692 = sbr.rel (%p690) target = $region56
        $region55: #{tpu_custom_call.1} parent=43 // pred_region
          %s693 = smul.u32 2, %s26
          %695 = vsyncadd [#allocation6], 0
          %s696 = smul.addr %s693, 8
          %s697 = scalar_lea.hbm %s6, %s696
          %s698 = sshll.u32 [#allocation5], 4
          %s699 = int_to_ptr.vmem [resolvable:$true] %s698
          %s700 = sshll.u32 %s697, 4
          %s701 = int_to_ptr.hbm [resolvable:$true] %s700
          %706 = dma.vmem_to_hbm [thread:$0]  %s699, 256, %s701, [#allocation6], 128, 128, 8
        $region56: #{tpu_custom_call.1} parent=43 // pred_fallthru
          _
        // Predicated region
        $region57: #{tpu_custom_call.1} parent=43 // pred_check
          %p707 = pneg %p241
        $region58: #{tpu_custom_call.1} parent=43 // pred_check_branch
          %709 = sbr.rel (%p707) target = $region60
        $region59: #{tpu_custom_call.1} parent=43 // pred_region
          %s710 = smul.u32 2, %s26
          %712 = vsyncadd [#allocation8], 0
          %s713 = smul.addr %s710, 8
          %s714 = scalar_lea.hbm %s7, %s713
          %s715 = sshll.u32 [#allocation7], 4
          %s716 = int_to_ptr.vmem [resolvable:$true] %s715
          %s717 = sshll.u32 %s714, 4
          %s718 = int_to_ptr.hbm [resolvable:$true] %s717
          %723 = dma.vmem_to_hbm [thread:$0]  %s716, 256, %s718, [#allocation8], 128, 128, 8
        $region60: #{tpu_custom_call.1} parent=43 // pred_fallthru
          _
        // Predicated region
        $region61: #{tpu_custom_call.1} parent=43 // pred_check
          %p724 = pneg %p215
        $region62: #{tpu_custom_call.1} parent=43 // pred_check_branch
          %726 = sbr.rel (%p724) target = $region64
        $region63: #{tpu_custom_call.1} parent=43 // pred_region
          %728 = dma.done [#allocation6], 256
        $region64: #{tpu_custom_call.1} parent=43 // pred_fallthru
          _
        // Predicated region
        $region65: #{tpu_custom_call.1} parent=43 // pred_check
          %p729 = pneg %p241
        $region66: #{tpu_custom_call.1} parent=43 // pred_check_branch
          %731 = sbr.rel (%p729) target = $region68
        $region67: #{tpu_custom_call.1} parent=43 // pred_region
          %733 = dma.done [#allocation8], 256
        $region68: #{tpu_custom_call.1} parent=43 // pred_fallthru
          _
      $region44: #{tpu_custom_call.1} parent=5 // pred_fallthru
        _
      %p734 = scmp.le.s32.totalorder 2, %s16
      // Predicated region
      $region69: #{tpu_custom_call.1} parent=5 // pred_check
        %p735 = pneg %p734
      $region70: #{tpu_custom_call.1} parent=5 // pred_check_branch
        %737 = sbr.rel (%p735) target = $region72
      $region71: #{tpu_custom_call.1} parent=5 // pred_region
        %s738 = ssub.s32 %s16, 2
      $region72: #{tpu_custom_call.1} parent=5 // pred_fallthru
        _
    $region6: #{tpu_custom_call.1} parent=1 // loop_footer
      %s20 = sadd.s32 1, %s16
    $region7: #{tpu_custom_call.1} parent=1 // loop_footer_branch
      %15 = sbr.rel target = $region3
    $region8: #{tpu_custom_call.1} parent=1 // loop_exit
      _
    %739 = vsyncpa [#allocation6], 1
    %s740 = scalar_lea.sflag [#allocation6], 1
    %741 = vsyncpa %s740, 1
    %742 = vsyncpa [#allocation8], 1

</llo_original>
